<compile_context>
chip_gen: v6e
topology: v6e:2x2x1
jax: 0.10.0
libtpu: 0.0.40
codegen_flags: <defaults>
</compile_context>

<pallas_src>
import jax
import jax.numpy as jnp
from jax.experimental import pallas as pl
from jax.experimental.pallas import tpu as pltpu


def _round_up(n, m):
    return ((n + m - 1) // m) * m


def _mdn_kernel(x_ref, wh_ref, bh_ref, wheads_ref, bheads_ref,
                pi_ref, mu_ref, sigma_ref):
    # Transposed ("feature-major") layout: batch on lanes.
    #   x      : (1, T)
    #   wh, bh : (H, 1)
    #   wheads : (3G, H)   rows [0:G)=pi, [G:2G)=mu, [2G:3G)=sigma
    #   bheads : (3G, 1)
    #   outputs: (G, T)    lane-dense stores
    G = pi_ref.shape[0]

    x = x_ref[...]                                               # (1, T)

    # Hidden layer is a K=1 contraction -> broadcast outer product on the VPU
    # instead of an MXU pass at 1/256 contraction utilization.
    zh = jnp.tanh(wh_ref[...] * x + bh_ref[...])                 # (H, T)

    # Single fused head matmul on the MXU: (3G, H) @ (H, T) -> (3G, T).
    heads = jnp.dot(wheads_ref[...], zh,
                    preferred_element_type=jnp.float32) + bheads_ref[...]

    logits = heads[0:G, :]                                       # pi logits
    mu_ref[...] = heads[G:2 * G, :]
    sigma_ref[...] = jnp.exp(heads[2 * G:3 * G, :])

    # Numerically stable softmax over the gaussian axis (G sublanes).
    m = jnp.max(logits, axis=0, keepdims=True)                   # (1, T)
    e = jnp.exp(logits - m)                                      # (G, T)
    denom = jnp.sum(e, axis=0, keepdims=True)                    # (1, T)
    # EUP approximate reciprocal (free slot) + one Newton refinement to keep
    # the 1e-5 tolerance.
    r = pl.reciprocal(denom, approx=True)
    r = r * (2.0 - denom * r)
    pi_ref[...] = e * r


def mdn_forward(x, params, *, block_lanes=1024):
    """MDN forward pass.

    x: (N, 1) float32.
    params: PyTorch-layout weights:
        w_h (H, 1), b_h (H, 1),
        w_pi/w_mu/w_sigma (G, H), b_pi/b_mu/b_sigma (G, 1).
    Returns (pi, mu, sigma), each (N, G) float32.
    """
    N = x.shape[0]
    H = params["w_h"].shape[0]
    G = params["w_pi"].shape[0]

    # Fuse the three heads into one weight / bias slab (one MXU matmul).
    w_heads = jnp.concatenate(
        [params["w_pi"], params["w_mu"], params["w_sigma"]], axis=0)   # (3G, H)
    b_heads = jnp.concatenate(
        [params["b_pi"], params["b_mu"], params["b_sigma"]], axis=0)   # (3G, 1)

    # Batch maps to lanes: tile must be a multiple of 128; pad ragged N.
    tile = max(128, min(_round_up(block_lanes, 128), _round_up(N, 128)))
    n_pad = _round_up(N, tile)

    x_t = x.reshape(1, N).astype(jnp.float32)
    if n_pad != N:
        x_t = jnp.pad(x_t, ((0, 0), (0, n_pad - N)))

    grid = (n_pad // tile,)

    def full_spec(shape):
        # Small weights/biases: keep fully resident every grid step.
        return pl.BlockSpec(shape, lambda i: (0, 0))

    out_spec = pl.BlockSpec((G, tile), lambda i: (0, i))
    out_shape = jax.ShapeDtypeStruct((G, n_pad), jnp.float32)

    pi_t, mu_t, sigma_t = pl.pallas_call(
        _mdn_kernel,
        out_shape=(out_shape, out_shape, out_shape),
        grid_spec=pltpu.PrefetchScalarGridSpec(
            num_scalar_prefetch=0,
            grid=grid,
            in_specs=[
                pl.BlockSpec((1, tile), lambda i: (0, i)),   # x tile (lanes)
                full_spec((H, 1)),                           # w_h
                full_spec((H, 1)),                           # b_h
                full_spec((3 * G, H)),                       # fused head weights
                full_spec((3 * G, 1)),                       # fused head biases
            ],
            out_specs=[out_spec, out_spec, out_spec],
        ),
        compiler_params=pltpu.CompilerParams(
            dimension_semantics=("parallel",),               # megacore sharding
        ),
    )(x_t, params["w_h"], params["b_h"], w_heads, b_heads)

    # Wrapper-side layout plumbing: back to the (N, G) module layout.
    pi = pi_t[:, :N].T
    mu = mu_t[:, :N].T
    sigma = sigma_t[:, :N].T
    return pi, mu, sigma


def init_mdn_params(key, n_hidden, n_gaussians):
    """Deterministic synthetic init (PyTorch-style uniform fan-in bounds).

    Weights are stored in nn.Linear layout (out_features, in_features);
    biases as (out_features, 1) for a clean 2D VMEM layout.
    """
    ks = jax.random.split(key, 8)

    def uni(k, shape, fan_in):
        bound = 1.0 / jnp.sqrt(fan_in)
        return jax.random.uniform(k, shape, jnp.float32, -bound, bound)

    H, G = n_hidden, n_gaussians
    return {
        "w_h":     uni(ks[0], (H, 1), 1.0),
        "b_h":     uni(ks[1], (H, 1), 1.0),
        "w_pi":    uni(ks[2], (G, H), float(H)),
        "b_pi":    uni(ks[3], (G, 1), float(H)),
        "w_mu":    uni(ks[4], (G, H), float(H)),
        "b_mu":    uni(ks[5], (G, 1), float(H)),
        "w_sigma": uni(ks[6], (G, H), float(H)),
        "b_sigma": uni(ks[7], (G, 1), float(H)),
    }


def mdn_reference(x, p):
    """Plain-JAX reference identical to the PyTorch forward."""
    zh = jnp.tanh(x @ p["w_h"].T + p["b_h"].T)
    pi = jax.nn.softmax(zh @ p["w_pi"].T + p["b_pi"].T, axis=-1)
    mu = zh @ p["w_mu"].T + p["b_mu"].T
    sigma = jnp.exp(zh @ p["w_sigma"].T + p["b_sigma"].T)
    return pi, mu, sigma


if __name__ == "__main__":
    key = jax.random.PRNGKey(0)
    k_x, k_p = jax.random.split(key)

    N, H, G = 256, 32, 8          # batch, n_hidden, n_gaussians
    x = jax.random.normal(k_x, (N, 1), jnp.float32)
    params = init_mdn_params(k_p, H, G)

    # tile=128 -> 2 grid steps even at this small demo size (keeps both v7x
    # TensorCores busy); in production use block_lanes=1024..8192.
    pi, mu, sigma = mdn_forward(x, params, block_lanes=128)
    jax.block_until_ready((pi, mu, sigma))

    # Correctness check against the pure-JAX reference.
    pi_r, mu_r, sigma_r = mdn_reference(x, params)
    assert pi.shape == (N, G) and mu.shape == (N, G) and sigma.shape == (N, G)
    assert jnp.allclose(pi, pi_r, atol=1e-5, rtol=1e-5)
    assert jnp.allclose(mu, mu_r, atol=1e-5, rtol=1e-5)
    assert jnp.allclose(sigma, sigma_r, atol=1e-5, rtol=1e-5)
    assert jnp.allclose(jnp.sum(pi, axis=-1), 1.0, atol=1e-5)

    print("KERNEL_OK")
</pallas_src>

<mosaic_0001>
module attributes {stable_mosaic.version = 11 : i64} {
  func.func @_mdn_kernel(%arg0: i32, %arg1: memref<1x128xf32, #tpu.memory_space<vmem>>, %arg2: memref<32x1xf32, #tpu.memory_space<vmem>>, %arg3: memref<32x1xf32, #tpu.memory_space<vmem>>, %arg4: memref<24x32xf32, #tpu.memory_space<vmem>>, %arg5: memref<24x1xf32, #tpu.memory_space<vmem>>, %arg6: memref<8x128xf32, #tpu.memory_space<vmem>>, %arg7: memref<8x128xf32, #tpu.memory_space<vmem>>, %arg8: memref<8x128xf32, #tpu.memory_space<vmem>>) attributes {dimension_semantics = [#tpu.dimension_semantics<parallel>], iteration_bounds = array<i64: 2>, scalar_prefetch = 0 : i64, scratch_operands = 0 : i64, tpu.core_type = #tpu.core_type<tc>, window_params = [{transform_indices = @transform_0, window_bounds = array<i64: 1, 128>}, {pipeline_mode = #tpu.pipeline_mode<synchronous>, transform_indices = @transform_1, window_bounds = array<i64: 32, 1>}, {pipeline_mode = #tpu.pipeline_mode<synchronous>, transform_indices = @transform_2, window_bounds = array<i64: 32, 1>}, {pipeline_mode = #tpu.pipeline_mode<synchronous>, transform_indices = @transform_3, window_bounds = array<i64: 24, 32>}, {pipeline_mode = #tpu.pipeline_mode<synchronous>, transform_indices = @transform_4, window_bounds = array<i64: 24, 1>}, {transform_indices = @transform_5, window_bounds = array<i64: 8, 128>}, {transform_indices = @transform_6, window_bounds = array<i64: 8, 128>}, {transform_indices = @transform_7, window_bounds = array<i64: 8, 128>}]} {
    %c0 = arith.constant 0 : index
    %c0_0 = arith.constant 0 : index
    %0 = vector.load %arg1[%c0, %c0_0] : memref<1x128xf32, #tpu.memory_space<vmem>>, vector<1x128xf32>
    %c0_1 = arith.constant 0 : index
    %c0_2 = arith.constant 0 : index
    %1 = vector.load %arg2[%c0_1, %c0_2] : memref<32x1xf32, #tpu.memory_space<vmem>>, vector<32x1xf32>
    %2 = vector.broadcast %1 : vector<32x1xf32> to vector<32x128xf32>
    %3 = vector.broadcast %0 : vector<1x128xf32> to vector<32x128xf32>
    %4 = arith.mulf %2, %3 : vector<32x128xf32>
    %c0_3 = arith.constant 0 : index
    %c0_4 = arith.constant 0 : index
    %5 = vector.load %arg3[%c0_3, %c0_4] : memref<32x1xf32, #tpu.memory_space<vmem>>, vector<32x1xf32>
    %6 = vector.broadcast %5 : vector<32x1xf32> to vector<32x128xf32>
    %7 = arith.addf %4, %6 : vector<32x128xf32>
    %8 = math.tanh %7 : vector<32x128xf32>
    %c0_5 = arith.constant 0 : index
    %c0_6 = arith.constant 0 : index
    %9 = vector.load %arg4[%c0_5, %c0_6] : memref<24x32xf32, #tpu.memory_space<vmem>>, vector<24x32xf32>
    %cst = arith.constant dense<0.000000e+00> : vector<24x128xf32>
    %10 = tpu.matmul %9, %8, %cst {dimension_numbers = #tpu.dot_dimension_numbers<[1], [0], [0], [1], [0, 0, 1, 1], [], []>} : vector<24x32xf32>, vector<32x128xf32>, vector<24x128xf32> -> vector<24x128xf32>
    %c0_7 = arith.constant 0 : index
    %c0_8 = arith.constant 0 : index
    %11 = vector.load %arg5[%c0_7, %c0_8] : memref<24x1xf32, #tpu.memory_space<vmem>>, vector<24x1xf32>
    %12 = vector.broadcast %11 : vector<24x1xf32> to vector<24x128xf32>
    %13 = arith.addf %10, %12 : vector<24x128xf32>
    %14 = vector.extract_strided_slice %13 {offsets = [0, 0], sizes = [8, 128], strides = [1, 1]} : vector<24x128xf32> to vector<8x128xf32>
    %15 = vector.extract_strided_slice %13 {offsets = [8, 0], sizes = [8, 128], strides = [1, 1]} : vector<24x128xf32> to vector<8x128xf32>
    %c0_9 = arith.constant 0 : index
    %c0_10 = arith.constant 0 : index
    %16 = vector.load %arg7[%c0_9, %c0_10] : memref<8x128xf32, #tpu.memory_space<vmem>>, vector<8x128xf32>
    tpu.vector_store %arg7[%c0_9, %c0_10], %15 {strides = array<i32>} : memref<8x128xf32, #tpu.memory_space<vmem>>, vector<8x128xf32>,
    %17 = vector.extract_strided_slice %13 {offsets = [16, 0], sizes = [8, 128], strides = [1, 1]} : vector<24x128xf32> to vector<8x128xf32>
    %18 = math.exp %17 : vector<8x128xf32>
    %c0_11 = arith.constant 0 : index
    %c0_12 = arith.constant 0 : index
    %19 = vector.load %arg8[%c0_11, %c0_12] : memref<8x128xf32, #tpu.memory_space<vmem>>, vector<8x128xf32>
    tpu.vector_store %arg8[%c0_11, %c0_12], %18 {strides = array<i32>} : memref<8x128xf32, #tpu.memory_space<vmem>>, vector<8x128xf32>,
    %cst_13 = arith.constant dense<0xFF800000> : vector<128xf32>
    %20 = vector.multi_reduction <maximumf>, %14, %cst_13 [0] : vector<8x128xf32> to vector<128xf32>
    %21 = vector.shape_cast %20 : vector<128xf32> to vector<1x128xf32>
    %22 = vector.broadcast %21 : vector<1x128xf32> to vector<8x128xf32>
    %23 = arith.subf %14, %22 : vector<8x128xf32>
    %24 = math.exp %23 : vector<8x128xf32>
    %cst_14 = arith.constant dense<0.000000e+00> : vector<128xf32>
    %25 = vector.multi_reduction <add>, %24, %cst_14 [0] : vector<8x128xf32> to vector<128xf32>
    %26 = vector.shape_cast %25 : vector<128xf32> to vector<1x128xf32>
    %27 = tpu.reciprocal %26 {approx = true} : vector<1x128xf32> -> vector<1x128xf32>
    %28 = arith.mulf %26, %27 : vector<1x128xf32>
    %cst_15 = arith.constant 2.000000e+00 : f32
    %29 = vector.broadcast %cst_15 : f32 to vector<1x128xf32>
    %30 = arith.subf %29, %28 : vector<1x128xf32>
    %31 = arith.mulf %27, %30 : vector<1x128xf32>
    %32 = vector.broadcast %31 : vector<1x128xf32> to vector<8x128xf32>
    %33 = arith.mulf %24, %32 : vector<8x128xf32>
    %c0_16 = arith.constant 0 : index
    %c0_17 = arith.constant 0 : index
    %34 = vector.load %arg6[%c0_16, %c0_17] : memref<8x128xf32, #tpu.memory_space<vmem>>, vector<8x128xf32>
    tpu.vector_store %arg6[%c0_16, %c0_17], %33 {strides = array<i32>} : memref<8x128xf32, #tpu.memory_space<vmem>>, vector<8x128xf32>,
    return
  }
  func.func @transform_0(%arg0: i32) -> (i32, i32) {
    %c0_i32 = arith.constant 0 : i32
    %c0_i32_0 = arith.constant 0 : i32
    return %c0_i32, %arg0 : i32, i32
  }
  func.func @transform_1(%arg0: i32) -> (i32, i32) {
    %c0_i32 = arith.constant 0 : i32
    %c0_i32_0 = arith.constant 0 : i32
    %c0_i32_1 = arith.constant 0 : i32
    return %c0_i32, %c0_i32_0 : i32, i32
  }
  func.func @transform_2(%arg0: i32) -> (i32, i32) {
    %c0_i32 = arith.constant 0 : i32
    %c0_i32_0 = arith.constant 0 : i32
    %c0_i32_1 = arith.constant 0 : i32
    return %c0_i32, %c0_i32_0 : i32, i32
  }
  func.func @transform_3(%arg0: i32) -> (i32, i32) {
    %c0_i32 = arith.constant 0 : i32
    %c0_i32_0 = arith.constant 0 : i32
    %c0_i32_1 = arith.constant 0 : i32
    return %c0_i32, %c0_i32_0 : i32, i32
  }
  func.func @transform_4(%arg0: i32) -> (i32, i32) {
    %c0_i32 = arith.constant 0 : i32
    %c0_i32_0 = arith.constant 0 : i32
    %c0_i32_1 = arith.constant 0 : i32
    return %c0_i32, %c0_i32_0 : i32, i32
  }
  func.func @transform_5(%arg0: i32) -> (i32, i32) {
    %c0_i32 = arith.constant 0 : i32
    %c0_i32_0 = arith.constant 0 : i32
    return %c0_i32, %arg0 : i32, i32
  }
  func.func @transform_6(%arg0: i32) -> (i32, i32) {
    %c0_i32 = arith.constant 0 : i32
    %c0_i32_0 = arith.constant 0 : i32
    return %c0_i32, %arg0 : i32, i32
  }
  func.func @transform_7(%arg0: i32) -> (i32, i32) {
    %c0_i32 = arith.constant 0 : i32
    %c0_i32_0 = arith.constant 0 : i32
    return %c0_i32, %arg0 : i32, i32
  }
}

</mosaic_0001>

<llo_original>
// kernel: tpu_custom_call.1
$region0: #{tpu_custom_call.1}
  #allocation0 [shape = 'u32[]', space=smem, size = 0x4, offset = 0x4, fixed_abs, tag = 'smem constant byte address 0x4 - core index']
  #allocation1 [shape = 'u32[144,128]{1,0:T(1,128)}', space=vmem, size = 0x12000, scoped, tag = 'internal scratch']
  %s0 = inlined_call_operand.vmem [shape: f32[1,256], index: 0, kind: input, shape index: {}]
  %s1 = inlined_call_operand.vmem [shape: f32[32,1], index: 1, kind: input, shape index: {}]
  %s2 = inlined_call_operand.vmem [shape: f32[32,1], index: 2, kind: input, shape index: {}]
  %s3 = inlined_call_operand.vmem [shape: f32[24,32], index: 3, kind: input, shape index: {}]
  %s4 = inlined_call_operand.vmem [shape: f32[24,1], index: 4, kind: input, shape index: {}]
  %s5 = inlined_call_operand.hbm [shape: f32[8,256], index: 5, kind: output, shape index: {0}]
  %s6 = inlined_call_operand.hbm [shape: f32[8,256], index: 6, kind: output, shape index: {1}]
  %s7 = inlined_call_operand.hbm [shape: f32[8,256], index: 7, kind: output, shape index: {2}]
  %8 = xla_tuple %s5, %s6, %s7
  %s9 = sld [smem:[#allocation0]]
  $region69: #{tpu_custom_call.1} parent=0
    _
  %s11 = ssub.s32 1, %s9
  %s12 = scalar_select 0, %s11, %s9
  $region1: #{tpu_custom_call.1} parent=0
    #allocation2 [shape = 'u8[8192]{0}', space=vmem, size = 0x2000, scoped, tag = 'output window, operand 0']
    #allocation3 [shape = 's32[2]{0}', space=sflag, size = 0x8, scoped, tag = 'scoped memory for tpu_custom_call.1']
    #allocation4 [shape = 'u8[8192]{0}', space=vmem, size = 0x2000, scoped, tag = 'output window, operand 1']
    #allocation5 [shape = 's32[2]{0}', space=sflag, size = 0x8, scoped, tag = 'scoped memory for tpu_custom_call.1']
    #allocation6 [shape = 'u8[8192]{0}', space=vmem, size = 0x2000, scoped, tag = 'output window, operand 2']
    %13 = vsyncpa [#allocation3], 0
    %s14 = scalar_lea.sflag [#allocation3], 1
    %15 = vsyncpa %s14, 0
    %16 = vsyncpa [#allocation5], 0
    %s17 = scalar_lea.sflag [#allocation5], 1
    %18 = vsyncpa %s17, 0
    loop: start=0, step=1, limit=4
    $region2: #{tpu_custom_call.1} parent=1 // loop_pre_header
      _
    $region3: #{tpu_custom_call.1} parent=1 // loop_header
      %s20 = sphi 0, %s24
      %p21 = scmp.ge.s32.totalorder %s20, 4
      %s30 = sphi 0, %s32
      %s33 = sphi 0, %s30
      %s34 = sphi 0, %s33
      %s50 = sphi 0, %s34
      %s54 = sphi 0, %s54
      %s56 = sphi 0, %s54
      %s57 = sphi 0, %s56
      %s71 = sphi 0, %s57
      %s75 = sphi 0, %s75
      %s77 = sphi 0, %s75
      %s78 = sphi 0, %s77
      %s92 = sphi 0, %s78
      %s96 = sphi 0, %s96
      %s98 = sphi 0, %s96
      %s99 = sphi 0, %s98
      %s113 = sphi 0, %s99
      %s117 = sphi 0, %s117
      %s119 = sphi 0, %s117
      %s120 = sphi 0, %s119
      %s134 = sphi 0, %s120
      %s140 = sphi 0, %s142
      %s143 = sphi 0, %s140
      %s144 = sphi 0, %s143
      %s160 = sphi 0, %s144
      %s166 = sphi 0, %s168
      %s169 = sphi 0, %s166
      %s170 = sphi 0, %s169
      %s186 = sphi 0, %s170
      %s192 = sphi 0, %s194
      %s195 = sphi 0, %s192
      %s196 = sphi 0, %s195
      %s212 = sphi 0, %s196
    $region4: #{tpu_custom_call.1} parent=1 // loop_header_branch
      %23 = sbr.rel (%p21) target = $region8
    $region5: #{tpu_custom_call.1} parent=1 // loop_body
      %s25 = ssub.s32 %s20, 1
      %s26 = ssub.s32 %s20, 2
      %s27 = sadd.s32 %s20, 1
      %s28 = ssub.s32 %s20, %s27
      %p29 = scmp.eq.s32.totalorder %s28, 0
      %s31 = sadd.s32 %s30, 1
      %s32 = scalar_select %p29, %s30, %s31
      %p35 = pneg %p29
      %p36 = scmp.eq.s32.totalorder %s20, 1
      %p37 = por %p35, %p36
      %p38 = scmp.ne.s32.totalorder %s30, %s33
      %p39 = scmp.eq.s32.totalorder %s20, 0
      %p40 = por %p38, %p39
      %p41 = scmp.ne.s32.totalorder %s30, %s33
      %p42 = scmp.eq.s32.totalorder %s25, 1
      %p43 = por %p41, %p42
      %p44 = scmp.ne.s32.totalorder %s33, %s34
      %p45 = scmp.eq.s32.totalorder %s25, 0
      %p46 = por %p44, %p45
      %p47 = scmp.ne.s32.totalorder %s33, %s34
      %p48 = scmp.eq.s32.totalorder %s26, 1
      %p49 = por %p47, %p48
      %p51 = scmp.ne.s32.totalorder %s34, %s50
      %p52 = scmp.eq.s32.totalorder %s26, 0
      %p53 = por %p51, %p52
      %s55 = sadd.s32 %s54, 1
      %p58 = scmp.eq.s32.totalorder %s20, 1
      %p59 = scmp.ne.s32.totalorder %s54, %s56
      %p60 = scmp.eq.s32.totalorder %s20, 0
      %p61 = por %p59, %p60
      %p62 = scmp.ne.s32.totalorder %s54, %s56
      %p63 = scmp.eq.s32.totalorder %s25, 1
      %p64 = por %p62, %p63
      %p65 = scmp.ne.s32.totalorder %s56, %s57
      %p66 = scmp.eq.s32.totalorder %s25, 0
      %p67 = por %p65, %p66
      %p68 = scmp.ne.s32.totalorder %s56, %s57
      %p69 = scmp.eq.s32.totalorder %s26, 1
      %p70 = por %p68, %p69
      %p72 = scmp.ne.s32.totalorder %s57, %s71
      %p73 = scmp.eq.s32.totalorder %s26, 0
      %p74 = por %p72, %p73
      %s76 = sadd.s32 %s75, 1
      %p79 = scmp.eq.s32.totalorder %s20, 1
      %p80 = scmp.ne.s32.totalorder %s75, %s77
      %p81 = scmp.eq.s32.totalorder %s20, 0
      %p82 = por %p80, %p81
      %p83 = scmp.ne.s32.totalorder %s75, %s77
      %p84 = scmp.eq.s32.totalorder %s25, 1
      %p85 = por %p83, %p84
      %p86 = scmp.ne.s32.totalorder %s77, %s78
      %p87 = scmp.eq.s32.totalorder %s25, 0
      %p88 = por %p86, %p87
      %p89 = scmp.ne.s32.totalorder %s77, %s78
      %p90 = scmp.eq.s32.totalorder %s26, 1
      %p91 = por %p89, %p90
      %p93 = scmp.ne.s32.totalorder %s78, %s92
      %p94 = scmp.eq.s32.totalorder %s26, 0
      %p95 = por %p93, %p94
      %s97 = sadd.s32 %s96, 1
      %p100 = scmp.eq.s32.totalorder %s20, 1
      %p101 = scmp.ne.s32.totalorder %s96, %s98
      %p102 = scmp.eq.s32.totalorder %s20, 0
      %p103 = por %p101, %p102
      %p104 = scmp.ne.s32.totalorder %s96, %s98
      %p105 = scmp.eq.s32.totalorder %s25, 1
      %p106 = por %p104, %p105
      %p107 = scmp.ne.s32.totalorder %s98, %s99
      %p108 = scmp.eq.s32.totalorder %s25, 0
      %p109 = por %p107, %p108
      %p110 = scmp.ne.s32.totalorder %s98, %s99
      %p111 = scmp.eq.s32.totalorder %s26, 1
      %p112 = por %p110, %p111
      %p114 = scmp.ne.s32.totalorder %s99, %s113
      %p115 = scmp.eq.s32.totalorder %s26, 0
      %p116 = por %p114, %p115
      %s118 = sadd.s32 %s117, 1
      %p121 = scmp.eq.s32.totalorder %s20, 1
      %p122 = scmp.ne.s32.totalorder %s117, %s119
      %p123 = scmp.eq.s32.totalorder %s20, 0
      %p124 = por %p122, %p123
      %p125 = scmp.ne.s32.totalorder %s117, %s119
      %p126 = scmp.eq.s32.totalorder %s25, 1
      %p127 = por %p125, %p126
      %p128 = scmp.ne.s32.totalorder %s119, %s120
      %p129 = scmp.eq.s32.totalorder %s25, 0
      %p130 = por %p128, %p129
      %p131 = scmp.ne.s32.totalorder %s119, %s120
      %p132 = scmp.eq.s32.totalorder %s26, 1
      %p133 = por %p131, %p132
      %p135 = scmp.ne.s32.totalorder %s120, %s134
      %p136 = scmp.eq.s32.totalorder %s26, 0
      %p137 = por %p135, %p136
      %s138 = ssub.s32 %s20, %s27
      %p139 = scmp.eq.s32.totalorder %s138, 0
      %s141 = sadd.s32 %s140, 1
      %s142 = scalar_select %p139, %s140, %s141
      %p145 = pneg %p139
      %p146 = scmp.eq.s32.totalorder %s20, 1
      %p147 = por %p145, %p146
      %p148 = scmp.ne.s32.totalorder %s140, %s143
      %p149 = scmp.eq.s32.totalorder %s20, 0
      %p150 = por %p148, %p149
      %p151 = scmp.ne.s32.totalorder %s140, %s143
      %p152 = scmp.eq.s32.totalorder %s25, 1
      %p153 = por %p151, %p152
      %p154 = scmp.ne.s32.totalorder %s143, %s144
      %p155 = scmp.eq.s32.totalorder %s25, 0
      %p156 = por %p154, %p155
      %p157 = scmp.ne.s32.totalorder %s143, %s144
      %p158 = scmp.eq.s32.totalorder %s26, 1
      %p159 = por %p157, %p158
      %p161 = scmp.ne.s32.totalorder %s144, %s160
      %p162 = scmp.eq.s32.totalorder %s26, 0
      %p163 = por %p161, %p162
      %s164 = ssub.s32 %s20, %s27
      %p165 = scmp.eq.s32.totalorder %s164, 0
      %s167 = sadd.s32 %s166, 1
      %s168 = scalar_select %p165, %s166, %s167
      %p171 = pneg %p165
      %p172 = scmp.eq.s32.totalorder %s20, 1
      %p173 = por %p171, %p172
      %p174 = scmp.ne.s32.totalorder %s166, %s169
      %p175 = scmp.eq.s32.totalorder %s20, 0
      %p176 = por %p174, %p175
      %p177 = scmp.ne.s32.totalorder %s166, %s169
      %p178 = scmp.eq.s32.totalorder %s25, 1
      %p179 = por %p177, %p178
      %p180 = scmp.ne.s32.totalorder %s169, %s170
      %p181 = scmp.eq.s32.totalorder %s25, 0
      %p182 = por %p180, %p181
      %p183 = scmp.ne.s32.totalorder %s169, %s170
      %p184 = scmp.eq.s32.totalorder %s26, 1
      %p185 = por %p183, %p184
      %p187 = scmp.ne.s32.totalorder %s170, %s186
      %p188 = scmp.eq.s32.totalorder %s26, 0
      %p189 = por %p187, %p188
      %s190 = ssub.s32 %s20, %s27
      %p191 = scmp.eq.s32.totalorder %s190, 0
      %s193 = sadd.s32 %s192, 1
      %s194 = scalar_select %p191, %s192, %s193
      %p197 = pneg %p191
      %p198 = scmp.eq.s32.totalorder %s20, 1
      %p199 = por %p197, %p198
      %p200 = scmp.ne.s32.totalorder %s192, %s195
      %p201 = scmp.eq.s32.totalorder %s20, 0
      %p202 = por %p200, %p201
      %p203 = scmp.ne.s32.totalorder %s192, %s195
      %p204 = scmp.eq.s32.totalorder %s25, 1
      %p205 = por %p203, %p204
      %p206 = scmp.ne.s32.totalorder %s195, %s196
      %p207 = scmp.eq.s32.totalorder %s25, 0
      %p208 = por %p206, %p207
      %p209 = scmp.ne.s32.totalorder %s195, %s196
      %p210 = scmp.eq.s32.totalorder %s26, 1
      %p211 = por %p209, %p210
      %p213 = scmp.ne.s32.totalorder %s196, %s212
      %p214 = scmp.eq.s32.totalorder %s26, 0
      %p215 = por %p213, %p214
      %p216 = scmp.le.s32.totalorder 1, %s20
      %p217 = scmp.lt.s32.totalorder %s20, 3
      %p218 = pnand %p216, %p217
      %p219 = pneg %p218
      // Predicated region
      $region9: #{tpu_custom_call.1} parent=5 // pred_check
        _
      $region10: #{tpu_custom_call.1} parent=5 // pred_check_branch
        %221 = sbr.rel (%p218) target = $region12
      $region11: #{tpu_custom_call.1} parent=5 // pred_region
        %s222 = ssub.s32 %s20, 1
        // Predicated region
        $region13: #{tpu_custom_call.1} parent=11 // pred_check
          %p223 = pneg %p67
        $region14: #{tpu_custom_call.1} parent=11 // pred_check_branch
          %225 = sbr.rel (%p223) target = $region16
        $region15: #{tpu_custom_call.1} parent=11 // pred_region
          _
        $region16: #{tpu_custom_call.1} parent=11 // pred_fallthru
          _
        // Predicated region
        $region17: #{tpu_custom_call.1} parent=11 // pred_check
          %p226 = pneg %p88
        $region18: #{tpu_custom_call.1} parent=11 // pred_check_branch
          %228 = sbr.rel (%p226) target = $region20
        $region19: #{tpu_custom_call.1} parent=11 // pred_region
          _
        $region20: #{tpu_custom_call.1} parent=11 // pred_fallthru
          _
        // Predicated region
        $region21: #{tpu_custom_call.1} parent=11 // pred_check
          %p229 = pneg %p109
        $region22: #{tpu_custom_call.1} parent=11 // pred_check_branch
          %231 = sbr.rel (%p229) target = $region24
        $region23: #{tpu_custom_call.1} parent=11 // pred_region
          _
        $region24: #{tpu_custom_call.1} parent=11 // pred_fallthru
          _
        // Predicated region
        $region25: #{tpu_custom_call.1} parent=11 // pred_check
          %p232 = pneg %p130
        $region26: #{tpu_custom_call.1} parent=11 // pred_check_branch
          %234 = sbr.rel (%p232) target = $region28
        $region27: #{tpu_custom_call.1} parent=11 // pred_region
          _
        $region28: #{tpu_custom_call.1} parent=11 // pred_fallthru
          _
      $region12: #{tpu_custom_call.1} parent=5 // pred_fallthru
        _
      %p235 = scmp.lt.s32.totalorder %s20, 2
      // Predicated region
      $region29: #{tpu_custom_call.1} parent=5 // pred_check
        %p236 = pneg %p235
      $region30: #{tpu_custom_call.1} parent=5 // pred_check_branch
        %238 = sbr.rel (%p236) target = $region32
      $region31: #{tpu_custom_call.1} parent=5 // pred_region
        // Predicated region
        $region33: #{tpu_custom_call.1} parent=31 // pred_check
          %p239 = pneg %p40
        $region34: #{tpu_custom_call.1} parent=31 // pred_check_branch
          %241 = sbr.rel (%p239) target = $region36
        $region35: #{tpu_custom_call.1} parent=31 // pred_region
          %p242 = scmp.lt.s32.totalorder %s20, 1
          %s243 = scalar_select %p242, %s20, 1
          %s244 = scalar_lea.vmem %s0, %s243
        $region36: #{tpu_custom_call.1} parent=31 // pred_fallthru
          _
      $region32: #{tpu_custom_call.1} parent=5 // pred_fallthru
        _
      %p245 = scmp.le.s32.totalorder 1, %s20
      %p246 = scmp.lt.s32.totalorder %s20, 3
      %p247 = pnand %p245, %p246
      %p248 = pneg %p247
      // Predicated region
      $region37: #{tpu_custom_call.1} parent=5 // pred_check
        _
      $region38: #{tpu_custom_call.1} parent=5 // pred_check_branch
        %250 = sbr.rel (%p247) target = $region40
      $region39: #{tpu_custom_call.1} parent=5 // pred_region
        %s251 = ssub.s32 %s20, 1
        %p252 = scmp.lt.s32.totalorder %s25, 1
        %s253 = scalar_select %p252, %s25, 1
        %s254 = scalar_lea.vmem %s0, %s253
        %p255 = pneg %p46
        %p256 = pneg %p43
        %p257 = pneg %p67
        %p258 = pneg %p64
        %p259 = pneg %p88
        %p260 = pneg %p85
        %p261 = pneg %p109
        %p262 = pneg %p106
        %p263 = pneg %p130
        %p264 = pneg %p127
        %p265 = pneg %p156
        %p266 = pneg %p153
        %s267 = sand.u32 %s143, 1
        %s268 = scalar_lea.sflag [#allocation3], %s267
        %s269 = sand.u32 %s143, 1
        %s270 = smul.addr %s269, 8
        %s271 = scalar_lea.vmem [#allocation2], %s270
        %p272 = pneg %p182
        %p273 = pneg %p179
        %s274 = sand.u32 %s25, 1
        %s275 = scalar_lea.sflag [#allocation5], %s274
        %s276 = sand.u32 %s169, 1
        %s277 = smul.addr %s276, 8
        %s278 = scalar_lea.vmem [#allocation4], %s277
        %p279 = pneg %p208
        %p280 = pneg %p205
        %s281 = sand.u32 %s25, 1
        %s282 = scalar_lea.sflag [#allocation5], %s281
        %s283 = sand.u32 %s195, 1
        %s284 = smul.addr %s283, 8
        %s285 = scalar_lea.vmem [#allocation6], %s284
        %p286 = scmp.lt.s32.totalorder %s25, 1
        %s287 = scalar_select %p286, %s25, 1
        %s288 = scalar_lea.vmem %s0, %s287
        %v289 = vld [vmem:[%s288] sm:$0x1]
        %v290 = vld [vmem:[%s1] sm:$0xff]
        %v291 = vld [vmem:[%s1 + $0x8] sm:$0xff]
        %v292 = vld [vmem:[%s1 + $0x10] sm:$0xff]
        %v293 = vld [vmem:[%s1 + $0x18] sm:$0xff]
        %295 = vset.pattern.permute.xlu0 0
        %296 = vperm.xlu0 %295, %v290
        %v297 = vpop.permute.xlu0 %296
        %300 = vset.pattern.permute.xlu0 0
        %301 = vperm.xlu0 %300, %v291
        %v302 = vpop.permute.xlu0 %301
        %305 = vset.pattern.permute.xlu0 0
        %306 = vperm.xlu0 %305, %v292
        %v307 = vpop.permute.xlu0 %306
        %310 = vset.pattern.permute.xlu0 0
        %311 = vperm.xlu0 %310, %v293
        %v312 = vpop.permute.xlu0 %311
        %v315 = vlaneseq
        %v316 = vshrl.u32 %v315, 7
        %v317 = vsub.s32 0, %v316
        %v318 = vrot.slane %v289, %v317
        %v320 = vmul.f32 %v297, %v318
        %v321 = vmul.f32 %v302, %v318
        %v322 = vmul.f32 %v307, %v318
        %v323 = vmul.f32 %v312, %v318
        %v324 = vld [vmem:[%s2] sm:$0xff]
        %v325 = vld [vmem:[%s2 + $0x8] sm:$0xff]
        %v326 = vld [vmem:[%s2 + $0x10] sm:$0xff]
        %v327 = vld [vmem:[%s2 + $0x18] sm:$0xff]
        %329 = vset.pattern.permute.xlu0 0
        %330 = vperm.xlu0 %329, %v324
        %v331 = vpop.permute.xlu0 %330
        %334 = vset.pattern.permute.xlu0 0
        %335 = vperm.xlu0 %334, %v325
        %v336 = vpop.permute.xlu0 %335
        %339 = vset.pattern.permute.xlu0 0
        %340 = vperm.xlu0 %339, %v326
        %v341 = vpop.permute.xlu0 %340
        %344 = vset.pattern.permute.xlu0 0
        %345 = vperm.xlu0 %344, %v327
        %v346 = vpop.permute.xlu0 %345
        %v348 = vadd.f32 %v320, %v331
        %v349 = vadd.f32 %v321, %v336
        %v350 = vadd.f32 %v322, %v341
        %v351 = vadd.f32 %v323, %v346
        %v352 = vtanh.pop %v348
        %v353 = vtanh.pop %v349
        %v354 = vtanh.pop %v350
        %v355 = vtanh.pop %v351
        %v356 = vld [vmem:[%s3] sm:$0xff]
        %v357 = vld [vmem:[%s3 + $0x8] sm:$0xff]
        %v358 = vld [vmem:[%s3 + $0x10] sm:$0xff]
        %v359 = vld [vmem:[%s4] sm:$0xff]
        %v360 = vld [vmem:[%s4 + $0x8] sm:$0xff]
        %v361 = vld [vmem:[%s4 + $0x10] sm:$0xff]
        %363 = vset.pattern.permute.xlu0 0
        %364 = vperm.xlu0 %363, %v359
        %v365 = vpop.permute.xlu0 %364
        %368 = vset.pattern.permute.xlu0 0
        %369 = vperm.xlu0 %368, %v360
        %v370 = vpop.permute.xlu0 %369
        %373 = vset.pattern.permute.xlu0 0
        %374 = vperm.xlu0 %373, %v361
        %v375 = vpop.permute.xlu0 %374
        %vm377 = vcmask 261120
        %v379 = vsel %vm377, %v356, 0
        %v382 = vsel %vm377, %v357, 0
        %v385 = vsel %vm377, %v358, 0
        %387 = vmatprep.subr.mxu0 0.0
        %388 = vmatpush1.msra.mxu0 0.0
        %389 = vmatprep.subr.mxu0 0.0
        %390 = vmatpush1.msra.mxu0 0.0
        %391 = vmatprep.subr.mxu0 0.0
        %392 = vmatpush1.msra.mxu0 0.0
        %393 = vmatprep.subr.mxu0 0.0
        %394 = vmatpush1.msra.mxu0 0.0
        %395 = vmatprep.subr.mxu0 0.0
        %396 = vmatpush1.msra.mxu0 0.0
        %397 = vmatprep.subr.mxu0 0.0
        %398 = vmatpush1.msra.mxu0 0.0
        %399 = vmatprep.subr.mxu0 0.0
        %400 = vmatpush1.msra.mxu0 0.0
        %401 = vmatprep.subr.mxu0 0.0
        %402 = vmatpush1.msra.mxu0 0.0
        %403 = vmatprep.subr.mxu0 0.0
        %404 = vmatpush1.msra.mxu0 0.0
        %405 = vmatprep.subr.mxu0 0.0
        %406 = vmatpush1.msra.mxu0 0.0
        %407 = vmatprep.subr.mxu0 0.0
        %408 = vmatpush1.msra.mxu0 0.0
        %409 = vmatprep.subr.mxu0 0.0
        %410 = vmatpush1.msra.mxu0 0.0
        %411 = vmatprep.subr.mxu0 0.0
        %412 = vmatpush1.msra.mxu0 %v355
        %413 = vmatprep.subr.mxu0 0.0
        %414 = vmatpush1.msra.mxu0 %v354
        %415 = vmatprep.subr.mxu0 0.0
        %416 = vmatpush1.msra.mxu0 %v353
        %417 = vmatprep.subr.mxu0 0.0
        %418 = vmatpush1.msra.mxu0 %v352
        %419 = vmatprep.subr.mxu0 0.0
        %420 = vmatpush2.msra.mxu0 0.0
        %421 = vmatprep.subr.mxu0 0.0
        %422 = vmatpush2.msra.mxu0 0.0
        %423 = vmatprep.subr.mxu0 0.0
        %424 = vmatpush2.msra.mxu0 0.0
        %425 = vmatprep.subr.mxu0 0.0
        %426 = vmatpush2.msra.mxu0 0.0
        %427 = vmatprep.subr.mxu0 0.0
        %428 = vmatpush2.msra.mxu0 0.0
        %429 = vmatprep.subr.mxu0 0.0
        %430 = vmatpush2.msra.mxu0 0.0
        %431 = vmatprep.subr.mxu0 0.0
        %432 = vmatpush2.msra.mxu0 0.0
        %433 = vmatprep.subr.mxu0 0.0
        %434 = vmatpush2.msra.mxu0 0.0
        %435 = vmatprep.subr.mxu0 0.0
        %436 = vmatpush2.msra.mxu0 0.0
        %437 = vmatprep.subr.mxu0 0.0
        %438 = vmatpush2.msra.mxu0 0.0
        %439 = vmatprep.subr.mxu0 0.0
        %440 = vmatpush2.msra.mxu0 0.0
        %441 = vmatprep.subr.mxu0 0.0
        %442 = vmatpush2.msra.mxu0 0.0
        %443 = vmatprep.subr.mxu0 0.0
        %444 = vmatpush2.msra.mxu0 0.0
        %445 = vmatprep.subr.mxu0 0.0
        %446 = vmatpush2.msra.mxu0 0.0
        %447 = vmatprep.subr.mxu0 0.0
        %448 = vmatpush2.msra.mxu0 0.0
        %449 = vmatprep.subr.mxu0 0.0
        %450 = vmatpush2.msra.mxu0 0.0
        %451 = vmatprep.mubr.f32.mxu0 0.0
        %452 = vmatmul.mubr.f32.gmra.mxu0 %v379
        %v453 = vpop.f32.mrf.mxu0
        %v454 = vadd.f32 %v365, %v453
        %v455 = vpop.f32.mrf.mxu0
        %456 = vmatprep.mubr.f32.mxu0 0.0
        %457 = vmatmul.mubr.f32.gmra.mxu0 %v382
        %v458 = vpop.f32.mrf.mxu0
        %v459 = vadd.f32 %v370, %v458
        %v460 = vpop.f32.mrf.mxu0
        %461 = vmatprep.mubr.f32.mxu0 0.0
        %462 = vmatmul.mubr.f32.gmra.mxu0 %v385
        %v463 = vpop.f32.mrf.mxu0
        %v464 = vadd.f32 %v375, %v463
        %v465 = vpop.f32.mrf.mxu0
        %466 = vdwg.mxu0
        %467 = vst [vmem:[%s278] sm:$0xff] %v459
        %v468 = vmul.f32 %v464, 1.442695
        %v469 = vpow.pop %v468
        %470 = vst [vmem:[%s285] sm:$0xff] %v469
        %v471 = vrot.slane %v454, 4
        %v472 = vmax.f32 %v454, %v471
        %v473 = vrot.slane %v472, 2
        %v474 = vmax.f32 %v472, %v473
        %v475 = vrot.slane %v474, 1
        %v476 = vmax.f32 %v474, %v475
        %v477 = vsub.f32 %v454, %v476
        %v478 = vmul.f32 %v477, 1.442695
        %v479 = vpow.pop %v478
        %v480 = vrot.slane %v479, 4
        %v481 = vadd.f32 %v479, %v480
        %v482 = vrot.slane %v481, 2
        %v483 = vadd.f32 %v481, %v482
        %v484 = vrot.slane %v483, 1
        %v485 = vadd.f32 %v483, %v484
        %v486 = vrcp.pop %v485
        %v487 = vmul.f32 %v485, %v486
        %v488 = vsub.f32 2.0, %v487
        %v489 = vmul.f32 %v486, %v488
        %v490 = vmul.f32 %v479, %v489
        %491 = vst [vmem:[%s271] sm:$0xff] %v490
        %s492 = sand.u32 %s143, 1
        %s493 = scalar_lea.sflag [#allocation3], %s492
        %s494 = sand.u32 %s143, 1
        %s495 = smul.addr %s494, 8
        %s496 = scalar_lea.vmem [#allocation2], %s495
        %s497 = sand.u32 %s25, 1
        %s498 = scalar_lea.sflag [#allocation5], %s497
        %s499 = sand.u32 %s169, 1
        %s500 = smul.addr %s499, 8
        %s501 = scalar_lea.vmem [#allocation4], %s500
        %s502 = sand.u32 %s25, 1
        %s503 = scalar_lea.sflag [#allocation5], %s502
        %s504 = sand.u32 %s195, 1
        %s505 = smul.addr %s504, 8
        %s506 = scalar_lea.vmem [#allocation6], %s505
        // Predicated region
        $region41: #{tpu_custom_call.1} parent=39 // pred_check
          %p507 = pneg %p153
        $region42: #{tpu_custom_call.1} parent=39 // pred_check_branch
          %509 = sbr.rel (%p507) target = $region44
        $region43: #{tpu_custom_call.1} parent=39 // pred_region
          %s511 = ssub.s32 128, 128
          %512 = vsyncadd %s493, %s511
          %s513 = smul.addr %s25, 128
          %s514 = scalar_lea.hbm %s5, %s513
          %s516 = sshll.u32 %s496, 4
          %s517 = int_to_ptr.vmem [resolvable:$true] %s516
          %519 = dma.vmem_to_hbm [thread:$0]  %s517, 128, %s514, %s493
        $region44: #{tpu_custom_call.1} parent=39 // pred_fallthru
          _
        // Predicated region
        $region45: #{tpu_custom_call.1} parent=39 // pred_check
          %p520 = pneg %p179
        $region46: #{tpu_custom_call.1} parent=39 // pred_check_branch
          %522 = sbr.rel (%p520) target = $region48
        $region47: #{tpu_custom_call.1} parent=39 // pred_region
          %s524 = ssub.s32 128, 128
          %525 = vsyncadd %s498, %s524
          %s526 = smul.addr %s25, 128
          %s527 = scalar_lea.hbm %s6, %s526
          %s529 = sshll.u32 %s501, 4
          %s530 = int_to_ptr.vmem [resolvable:$true] %s529
          %532 = dma.vmem_to_hbm [thread:$0]  %s530, 128, %s527, %s498
        $region48: #{tpu_custom_call.1} parent=39 // pred_fallthru
          _
        // Predicated region
        $region49: #{tpu_custom_call.1} parent=39 // pred_check
          %p533 = pneg %p205
        $region50: #{tpu_custom_call.1} parent=39 // pred_check_branch
          %535 = sbr.rel (%p533) target = $region52
        $region51: #{tpu_custom_call.1} parent=39 // pred_region
          %s537 = ssub.s32 128, 128
          %538 = vsyncadd %s503, %s537
          %s539 = smul.addr %s25, 128
          %s540 = scalar_lea.hbm %s7, %s539
          %s542 = sshll.u32 %s506, 4
          %s543 = int_to_ptr.vmem [resolvable:$true] %s542
          %545 = dma.vmem_to_hbm [thread:$0]  %s543, 128, %s540, %s503
        $region52: #{tpu_custom_call.1} parent=39 // pred_fallthru
          _
      $region40: #{tpu_custom_call.1} parent=5 // pred_fallthru
        _
      %p546 = scmp.le.s32.totalorder 2, %s20
      // Predicated region
      $region53: #{tpu_custom_call.1} parent=5 // pred_check
        %p547 = pneg %p546
      $region54: #{tpu_custom_call.1} parent=5 // pred_check_branch
        %549 = sbr.rel (%p547) target = $region56
      $region55: #{tpu_custom_call.1} parent=5 // pred_region
        %s550 = ssub.s32 %s20, 2
        // Predicated region
        $region57: #{tpu_custom_call.1} parent=55 // pred_check
          %p551 = pneg %p159
        $region58: #{tpu_custom_call.1} parent=55 // pred_check_branch
          %553 = sbr.rel (%p551) target = $region60
        $region59: #{tpu_custom_call.1} parent=55 // pred_region
          %s554 = sand.u32 %s144, 1
          %s555 = scalar_lea.sflag [#allocation3], %s554
          %s556 = sand.u32 %s144, 1
          %s557 = smul.addr %s556, 8
          %s558 = scalar_lea.vmem [#allocation2], %s557
          %559 = dma.done %s555, 128
        $region60: #{tpu_custom_call.1} parent=55 // pred_fallthru
          _
        // Predicated region
        $region61: #{tpu_custom_call.1} parent=55 // pred_check
          %p560 = pneg %p185
        $region62: #{tpu_custom_call.1} parent=55 // pred_check_branch
          %562 = sbr.rel (%p560) target = $region64
        $region63: #{tpu_custom_call.1} parent=55 // pred_region
          %s563 = sand.u32 %s26, 1
          %s564 = scalar_lea.sflag [#allocation5], %s563
          %s565 = sand.u32 %s170, 1
          %s566 = smul.addr %s565, 8
          %s567 = scalar_lea.vmem [#allocation4], %s566
          %568 = dma.done %s564, 128
        $region64: #{tpu_custom_call.1} parent=55 // pred_fallthru
          _
        // Predicated region
        $region65: #{tpu_custom_call.1} parent=55 // pred_check
          %p569 = pneg %p211
        $region66: #{tpu_custom_call.1} parent=55 // pred_check_branch
          %571 = sbr.rel (%p569) target = $region68
        $region67: #{tpu_custom_call.1} parent=55 // pred_region
          %s572 = sand.u32 %s26, 1
          %s573 = scalar_lea.sflag [#allocation5], %s572
          %s574 = sand.u32 %s196, 1
          %s575 = smul.addr %s574, 8
          %s576 = scalar_lea.vmem [#allocation6], %s575
          %577 = dma.done %s573, 128
        $region68: #{tpu_custom_call.1} parent=55 // pred_fallthru
          _
      $region56: #{tpu_custom_call.1} parent=5 // pred_fallthru
        _
    $region6: #{tpu_custom_call.1} parent=1 // loop_footer
      %s24 = sadd.s32 1, %s20
    $region7: #{tpu_custom_call.1} parent=1 // loop_footer_branch
      %19 = sbr.rel target = $region3
    $region8: #{tpu_custom_call.1} parent=1 // loop_exit
      _
    %578 = vsyncpa [#allocation3], 1
    %s579 = scalar_lea.sflag [#allocation3], 1
    %580 = vsyncpa %s579, 1
    %581 = vsyncpa [#allocation5], 1
    %s582 = scalar_lea.sflag [#allocation5], 1
    %583 = vsyncpa %s582, 1

</llo_original>
